<compile_context>
chip_gen: v5e
topology: v5e:2x2
jax: 0.10.0
libtpu: 0.0.40
codegen_flags: <defaults>
</compile_context>

<pallas_src>
import jax
import jax.numpy as jnp
from jax.experimental import pallas as pl
from jax.experimental.pallas import tpu as pltpu


def candidate_encoder_kernel(x_ref, w_ref, b_ref, o_ref):
    # x_ref: (tm, Kp)   packed input rows (lane-dense)
    # w_ref: (Kp, Np)   block-diagonal weight (resident across the grid)
    # b_ref: (1,  Np)   tiled bias, f32
    # o_ref: (tm, Np)   packed output rows (lane-dense)
    y = jnp.dot(x_ref[...], w_ref[...], preferred_element_type=jnp.float32)
    y = y + b_ref[...]
    # LeakyReLU(0.2): for slope < 1, max(y, 0.2*y) == where(y > 0, y, 0.2*y)
    o_ref[...] = jnp.maximum(y, 0.2 * y).astype(o_ref.dtype)


def _ceil_to(x, m):
    return -(-x // m) * m


def candidate_encoder(candidate_emb, weight_t, bias, *, tm=1024):
    """candidate_emb: (B, N, news_dim); weight_t: (news_dim, out_dim) = W^T; bias: (out_dim,).

    Returns LeakyReLU_0.2(candidate_emb @ weight_t + bias) with shape (B, N, out_dim),
    in candidate_emb.dtype (f32 or bf16; accumulation is always f32).
    """
    B, N, news_dim = candidate_emb.shape
    K, out_dim = weight_t.shape
    assert K == news_dim
    dtype = candidate_emb.dtype
    M = B * N

    # Lane-packing factor: pack p logical rows into one 128-lane row when possible.
    if news_dim == out_dim and out_dim < 128 and 128 % out_dim == 0:
        p = 128 // out_dim
    else:
        p = 1
    Kp, Np = news_dim * p, out_dim * p

    # Flatten and pad rows to a multiple of the packing factor.
    x = candidate_emb.reshape(M, news_dim)
    Mp = _ceil_to(M, p)
    if Mp != M:
        x = jnp.pad(x, ((0, Mp - M), (0, 0)))
    M4 = Mp // p
    xp = x.reshape(M4, Kp)

    # Packed (block-diagonal) weight and tiled bias.
    if p > 1:
        w = jnp.kron(jnp.eye(p, dtype=weight_t.dtype), weight_t)   # (Kp, Np)
        b = jnp.tile(bias, p)                                      # (Np,)
    else:
        w, b = weight_t, bias
    w = w.astype(dtype)
    b2d = b.reshape(1, Np).astype(jnp.float32)

    # Row tile: respect sublane packing for the I/O dtype (bf16 needs multiples of 16).
    sub = 16 if dtype == jnp.bfloat16 else 8
    tm4 = min(_ceil_to(tm, sub), _ceil_to(M4, sub))
    M4p = _ceil_to(M4, tm4)
    if M4p != M4:
        xp = jnp.pad(xp, ((0, M4p - M4), (0, 0)))

    grid = (M4p // tm4,)

    out = pl.pallas_call(
        candidate_encoder_kernel,
        out_shape=jax.ShapeDtypeStruct((M4p, Np), dtype),
        grid_spec=pltpu.PrefetchScalarGridSpec(
            num_scalar_prefetch=0,
            grid=grid,
            in_specs=[
                pl.BlockSpec((tm4, Kp), lambda i: (i, 0)),   # packed row tile of x
                pl.BlockSpec((Kp, Np), lambda i: (0, 0)),    # full (block-diag) weight
                pl.BlockSpec((1, Np), lambda i: (0, 0)),     # full tiled bias
            ],
            out_specs=pl.BlockSpec((tm4, Np), lambda i: (i, 0)),
        ),
        compiler_params=pltpu.CompilerParams(
            dimension_semantics=("parallel",),               # rows split across TCs on v7x
        ),
    )(xp, w, b2d)

    out = out[:M4].reshape(Mp, out_dim)[:M]
    return out.reshape(B, N, out_dim)


def reference(candidate_emb, weight_t, bias):
    y = jnp.einsum("bnd,de->bne", candidate_emb, weight_t) + bias
    return jnp.where(y > 0, y, 0.2 * y)


if __name__ == "__main__":
    # Small config consistent with the module: head_dim=8, head_num=4
    head_dim, head_num = 8, 4
    news_dim = head_dim * head_num      # 32
    output_dim = head_dim * head_num    # 32
    batch, num_news = 2, 8

    key = jax.random.PRNGKey(0)
    k_x, k_w, k_b = jax.random.split(key, 3)

    candidate_emb = jax.random.normal(k_x, (batch, num_news, news_dim), dtype=jnp.float32)
    # Deterministic synthetic parameters. PyTorch Linear.weight is (out, in);
    # we store it pre-transposed as (in, out).
    weight_t = (jax.random.normal(k_w, (news_dim, output_dim), dtype=jnp.float32)
                * (1.0 / jnp.sqrt(news_dim)))
    bias = jax.random.normal(k_b, (output_dim,), dtype=jnp.float32) * 0.01

    ref = reference(candidate_emb, weight_t, bias)

    # f32 path (exact)
    out = jax.block_until_ready(candidate_encoder(candidate_emb, weight_t, bias))
    assert out.shape == (batch, num_news, output_dim)
    assert jnp.allclose(out, ref, atol=1e-5, rtol=1e-5)

    # bf16 I/O path (f32 accumulation inside the kernel)
    out_bf16 = jax.block_until_ready(
        candidate_encoder(candidate_emb.astype(jnp.bfloat16), weight_t, bias))
    assert out_bf16.dtype == jnp.bfloat16
    assert jnp.allclose(out_bf16.astype(jnp.float32), ref, atol=1e-1, rtol=5e-2)

    print("KERNEL_OK")
</pallas_src>

<mosaic_0001>
module attributes {stable_mosaic.version = 11 : i64} {
  func.func @candidate_encoder_kernel(%arg0: i32, %arg1: memref<8x128xf32, #tpu.memory_space<vmem>>, %arg2: memref<128x128xf32, #tpu.memory_space<vmem>>, %arg3: memref<1x128xf32, #tpu.memory_space<vmem>>, %arg4: memref<8x128xf32, #tpu.memory_space<vmem>>) attributes {dimension_semantics = [#tpu.dimension_semantics<parallel>], iteration_bounds = array<i64: 1>, scalar_prefetch = 0 : i64, scratch_operands = 0 : i64, tpu.core_type = #tpu.core_type<tc>, window_params = [{transform_indices = @transform_0, window_bounds = array<i64: 8, 128>}, {pipeline_mode = #tpu.pipeline_mode<synchronous>, transform_indices = @transform_1, window_bounds = array<i64: 128, 128>}, {pipeline_mode = #tpu.pipeline_mode<synchronous>, transform_indices = @transform_2, window_bounds = array<i64: 1, 128>}, {transform_indices = @transform_3, window_bounds = array<i64: 8, 128>}]} {
    %c0 = arith.constant 0 : index
    %c0_0 = arith.constant 0 : index
    %0 = vector.load %arg1[%c0, %c0_0] : memref<8x128xf32, #tpu.memory_space<vmem>>, vector<8x128xf32>
    %c0_1 = arith.constant 0 : index
    %c0_2 = arith.constant 0 : index
    %1 = vector.load %arg2[%c0_1, %c0_2] : memref<128x128xf32, #tpu.memory_space<vmem>>, vector<128x128xf32>
    %cst = arith.constant dense<0.000000e+00> : vector<8x128xf32>
    %2 = tpu.matmul %0, %1, %cst {dimension_numbers = #tpu.dot_dimension_numbers<[1], [0], [0], [1], [0, 0, 1, 1], [], []>} : vector<8x128xf32>, vector<128x128xf32>, vector<8x128xf32> -> vector<8x128xf32>
    %c0_3 = arith.constant 0 : index
    %c0_4 = arith.constant 0 : index
    %3 = vector.load %arg3[%c0_3, %c0_4] : memref<1x128xf32, #tpu.memory_space<vmem>>, vector<1x128xf32>
    %4 = vector.broadcast %3 : vector<1x128xf32> to vector<8x128xf32>
    %5 = arith.addf %2, %4 : vector<8x128xf32>
    %cst_5 = arith.constant 2.000000e-01 : f32
    %6 = vector.broadcast %cst_5 : f32 to vector<8x128xf32>
    %7 = arith.mulf %6, %5 : vector<8x128xf32>
    %8 = arith.maximumf %5, %7 : vector<8x128xf32>
    %c0_6 = arith.constant 0 : index
    %c0_7 = arith.constant 0 : index
    %9 = vector.load %arg4[%c0_6, %c0_7] : memref<8x128xf32, #tpu.memory_space<vmem>>, vector<8x128xf32>
    tpu.vector_store %arg4[%c0_6, %c0_7], %8 {strides = array<i32>} : memref<8x128xf32, #tpu.memory_space<vmem>>, vector<8x128xf32>,
    return
  }
  func.func @transform_0(%arg0: i32) -> (i32, i32) {
    %c0_i32 = arith.constant 0 : i32
    %c0_i32_0 = arith.constant 0 : i32
    return %arg0, %c0_i32 : i32, i32
  }
  func.func @transform_1(%arg0: i32) -> (i32, i32) {
    %c0_i32 = arith.constant 0 : i32
    %c0_i32_0 = arith.constant 0 : i32
    %c0_i32_1 = arith.constant 0 : i32
    return %c0_i32, %c0_i32_0 : i32, i32
  }
  func.func @transform_2(%arg0: i32) -> (i32, i32) {
    %c0_i32 = arith.constant 0 : i32
    %c0_i32_0 = arith.constant 0 : i32
    %c0_i32_1 = arith.constant 0 : i32
    return %c0_i32, %c0_i32_0 : i32, i32
  }
  func.func @transform_3(%arg0: i32) -> (i32, i32) {
    %c0_i32 = arith.constant 0 : i32
    %c0_i32_0 = arith.constant 0 : i32
    return %arg0, %c0_i32 : i32, i32
  }
}

</mosaic_0001>

<llo_original>
// kernel: tpu_custom_call.1
$region0: #{tpu_custom_call.1}
  #allocation0 [shape = 'u32[]', space=smem, size = 0x4, offset = 0x4, fixed_abs, tag = 'smem constant byte address 0x4 - core index']
  #allocation1 [shape = 'u32[72,128]{1,0:T(1,128)}', space=vmem, size = 0x9000, scoped, tag = 'internal scratch']
  %s0 = inlined_call_operand.hbm [shape: f32[8,128], index: 0, kind: input, shape index: {}]
  %s1 = inlined_call_operand.hbm [shape: f32[128,128], index: 1, kind: input, shape index: {}]
  %s2 = inlined_call_operand.vmem [shape: f32[1,128], index: 2, kind: input, shape index: {}]
  %s3 = inlined_call_operand.hbm [shape: f32[8,128], index: 3, kind: output, shape index: {}]
  %s4 = sld [smem:[#allocation0]]
  $region30: #{tpu_custom_call.1} parent=0
    _
  %s6 = ssub.s32 1, %s4
  %s7 = scalar_select 0, %s6, %s4
  $region1: #{tpu_custom_call.1} parent=0
    #allocation2 [shape = 'u8[4096]{0}', space=vmem, size = 0x1000, scoped, tag = 'input window, operand 0, single buffered']
    #allocation3 [shape = 's32[1]{0}', space=sflag, size = 0x4, scoped, tag = 'scoped memory for tpu_custom_call.1']
    #allocation4 [shape = 's32[1]{0}', space=sflag, size = 0x4, scoped, tag = 'scoped memory for tpu_custom_call.1']
    #allocation5 [shape = 'u8[65536]{0}', space=vmem, size = 0x10000, scoped, tag = 'input window, operand 1, single buffered']
    #allocation6 [shape = 's32[1]{0}', space=sflag, size = 0x4, scoped, tag = 'scoped memory for tpu_custom_call.1']
    #allocation7 [shape = 'u8[4096]{0}', space=vmem, size = 0x1000, scoped, tag = 'output window, operand 0, single buffered']
    %8 = vsyncpa [#allocation3], 0
    %9 = vsyncpa [#allocation6], 0
    %10 = vsyncpa [#allocation4], 0
    // Predicated region
    $region2: #{tpu_custom_call.1} parent=1 // pred_check
      _
    $region3: #{tpu_custom_call.1} parent=1 // pred_check_branch
      %12 = sbr.rel (0) target = $region5
    $region4: #{tpu_custom_call.1} parent=1 // pred_region
      %14 = vsyncadd [#allocation3], 0
      %s16 = sshll.u32 %s0, 4
      %s17 = int_to_ptr.hbm [resolvable:$true] %s16
      %s18 = sshll.u32 [#allocation2], 4
      %s19 = int_to_ptr.vmem [resolvable:$true] %s18
      %21 = dma.hbm_to_vmem [thread:$0]  %s17, 128, %s19, [#allocation3]
    $region5: #{tpu_custom_call.1} parent=1 // pred_fallthru
      _
    // Predicated region
    $region6: #{tpu_custom_call.1} parent=1 // pred_check
      _
    $region7: #{tpu_custom_call.1} parent=1 // pred_check_branch
      %23 = sbr.rel (0) target = $region9
    $region8: #{tpu_custom_call.1} parent=1 // pred_region
      %25 = vsyncadd [#allocation6], 0
      %s26 = sshll.u32 %s1, 4
      %s27 = int_to_ptr.hbm [resolvable:$true] %s26
      %s28 = sshll.u32 [#allocation5], 4
      %s29 = int_to_ptr.vmem [resolvable:$true] %s28
      %34 = dma.hbm_to_vmem [thread:$0]  %s27, 2048, %s29, [#allocation6], 128, 128, 8
    $region9: #{tpu_custom_call.1} parent=1 // pred_fallthru
      _
    // Predicated region
    $region10: #{tpu_custom_call.1} parent=1 // pred_check
      _
    $region11: #{tpu_custom_call.1} parent=1 // pred_check_branch
      %36 = sbr.rel (0) target = $region13
    $region12: #{tpu_custom_call.1} parent=1 // pred_region
      _
    $region13: #{tpu_custom_call.1} parent=1 // pred_fallthru
      _
    // Predicated region
    $region14: #{tpu_custom_call.1} parent=1 // pred_check
      _
    $region15: #{tpu_custom_call.1} parent=1 // pred_check_branch
      %38 = sbr.rel (0) target = $region17
    $region16: #{tpu_custom_call.1} parent=1 // pred_region
      %40 = dma.done [#allocation3], 128
    $region17: #{tpu_custom_call.1} parent=1 // pred_fallthru
      _
    // Predicated region
    $region18: #{tpu_custom_call.1} parent=1 // pred_check
      _
    $region19: #{tpu_custom_call.1} parent=1 // pred_check_branch
      %42 = sbr.rel (0) target = $region21
    $region20: #{tpu_custom_call.1} parent=1 // pred_region
      %44 = dma.done [#allocation6], 2048
    $region21: #{tpu_custom_call.1} parent=1 // pred_fallthru
      _
    %v45 = vld [vmem:[#allocation2] sm:$0xff]
    %v46 = vld [vmem:[#allocation5] sm:$0xff]
    %v47 = vld [vmem:[#allocation5 + $0x8] sm:$0xff]
    %v48 = vld [vmem:[#allocation5 + $0x10] sm:$0xff]
    %v49 = vld [vmem:[#allocation5 + $0x18] sm:$0xff]
    %v50 = vld [vmem:[#allocation5 + $0x20] sm:$0xff]
    %v51 = vld [vmem:[#allocation5 + $0x28] sm:$0xff]
    %v52 = vld [vmem:[#allocation5 + $0x30] sm:$0xff]
    %v53 = vld [vmem:[#allocation5 + $0x38] sm:$0xff]
    %v54 = vld [vmem:[#allocation5 + $0x40] sm:$0xff]
    %v55 = vld [vmem:[#allocation5 + $0x48] sm:$0xff]
    %v56 = vld [vmem:[#allocation5 + $0x50] sm:$0xff]
    %v57 = vld [vmem:[#allocation5 + $0x58] sm:$0xff]
    %v58 = vld [vmem:[#allocation5 + $0x60] sm:$0xff]
    %v59 = vld [vmem:[#allocation5 + $0x68] sm:$0xff]
    %v60 = vld [vmem:[#allocation5 + $0x70] sm:$0xff]
    %v61 = vld [vmem:[#allocation5 + $0x78] sm:$0xff]
    %v62 = vld [vmem:[%s2] sm:$0x1]
    %v64 = vperm.slane %v62, 0
    %66 = vmatpush.msra.mxu0 %v61
    %67 = vmatpush.msra.mxu0 %v60
    %68 = vmatpush.msra.mxu0 %v59
    %69 = vmatpush.msra.mxu0 %v58
    %70 = vmatpush.msra.mxu0 %v57
    %71 = vmatpush.msra.mxu0 %v56
    %72 = vmatpush.msra.mxu0 %v55
    %73 = vmatpush.msra.mxu0 %v54
    %74 = vmatpush.msra.mxu0 %v53
    %75 = vmatpush.msra.mxu0 %v52
    %76 = vmatpush.msra.mxu0 %v51
    %77 = vmatpush.msra.mxu0 %v50
    %78 = vmatpush.msra.mxu0 %v49
    %79 = vmatpush.msra.mxu0 %v48
    %80 = vmatpush.msra.mxu0 %v47
    %81 = vmatpush.msra.mxu0 %v46
    %82 = vmatmul.f32.gmra.mxu0 %v45
    %v83 = vpop.f32.mrf.mxu0
    %v84 = vadd.f32 %v64, %v83
    %85 = vdwg.mxu0
    %v86 = vmul.f32 %v84, 0.2
    %v87 = vmax.f32 %v84, %v86
    %88 = vst [vmem:[#allocation7] sm:$0xff] %v87
    // Predicated region
    $region22: #{tpu_custom_call.1} parent=1 // pred_check
      _
    $region23: #{tpu_custom_call.1} parent=1 // pred_check_branch
      %90 = sbr.rel (0) target = $region25
    $region24: #{tpu_custom_call.1} parent=1 // pred_region
      %92 = vsyncadd [#allocation4], 0
      %s94 = sshll.u32 [#allocation7], 4
      %s95 = int_to_ptr.vmem [resolvable:$true] %s94
      %s96 = sshll.u32 %s3, 4
      %s97 = int_to_ptr.hbm [resolvable:$true] %s96
      %99 = dma.vmem_to_hbm [thread:$0]  %s95, 128, %s97, [#allocation4]
    $region25: #{tpu_custom_call.1} parent=1 // pred_fallthru
      _
    // Predicated region
    $region26: #{tpu_custom_call.1} parent=1 // pred_check
      _
    $region27: #{tpu_custom_call.1} parent=1 // pred_check_branch
      %101 = sbr.rel (0) target = $region29
    $region28: #{tpu_custom_call.1} parent=1 // pred_region
      %103 = dma.done [#allocation4], 128
    $region29: #{tpu_custom_call.1} parent=1 // pred_fallthru
      _
    %104 = vsyncpa [#allocation3], 1
    %105 = vsyncpa [#allocation6], 1
    %106 = vsyncpa [#allocation4], 1

</llo_original>
